<compile_context>
chip_gen: v5e
topology: v5e:2x2
jax: 0.10.0
libtpu: 0.0.40
codegen_flags: <defaults>
</compile_context>

<pallas_src>
import functools
import math

import jax
import jax.numpy as jnp
from jax.experimental import pallas as pl
from jax.experimental.pallas import tpu as pltpu


# ----------------------------- helpers ------------------------------------ #

_LANE = 128
_MAX_TILE_S = 128 * 1024      # flattened-path lane-tile cap (multiple of 128)
_MAX_TILE_L = 32 * 1024       # native-path lane-tile cap (multiple of 128)


def _round_up(x, m):
    return (x + m - 1) // m * m


def _vmem_caps():
    """Generation-aware (budget, vmem_limit) in bytes.

    v5e/v6e: 128 MiB VMEM -> budget 64 MiB, limit 96 MiB.
    v7x:      64 MiB/TC   -> budget 32 MiB, limit 48 MiB.
    Falls back to the v7x-safe numbers if the query fails.
    """
    cap = 64 * 1024 * 1024
    try:
        info = pltpu.get_tpu_info()
        cap = int(getattr(info, "vmem_capacity_bytes", cap)) or cap
    except Exception:
        pass
    budget = min(cap // 2, 64 * 1024 * 1024)
    limit = min((cap * 3) // 4, 96 * 1024 * 1024)
    return budget, limit


def _choose_tile_s(s, c_in, c_out, itemsize, budget, *, project, n_batch):
    """Lane tile for the flattened (N, C, S) layout.

    Counts sublane padding of the channel axis (8 rows f32 / 16 bf16),
    double buffering of the in/out tiles and, for project mode, the f32
    matmul accumulator + epilogue temporary.
    """
    sub = max(8, 32 // itemsize)
    c_in_p = _round_up(c_in, sub)
    c_out_p = _round_up(c_out, sub)
    per_lane = 2 * (c_in_p + c_out_p) * itemsize          # double-buffered in+out
    if project:
        per_lane += 2 * _round_up(c_out, 8) * 4           # f32 acc (+ temp)
    budget_eff = max(per_lane * _LANE, budget - (1 << 20))  # W/bias/compiler headroom
    tile = (budget_eff // per_lane) // _LANE * _LANE
    tile = max(_LANE, min(tile, _MAX_TILE_S, _round_up(s, _LANE)))
    if n_batch == 1 and s > _LANE:
        # keep >=2 grid steps so v7x's two TensorCores both get work
        tile = min(tile, max(_LANE, _round_up(-(-s // 2), _LANE)))
    return tile


def _choose_tile_pl(p, l, b_outer, n, c_in, c_out, itemsize, budget):
    """(sublane, lane) tile for the native (N, C, B, P, L) pad layout.

    Lane tile must be a multiple of 128 or the full extent; sublane tile a
    multiple of the dtype sublane packing (8 f32 / 16 bf16) or full extent.
    """
    sub = max(8, 32 // itemsize)
    budget_eff = max(1, budget - (1 << 20))
    if l % _LANE == 0:
        tl = min(l, _MAX_TILE_L)
        # shrink lanes until at least `sub` sublane rows (double-buffered) fit
        while tl > _LANE and 2 * (c_in + c_out) * tl * itemsize * sub > budget_eff:
            tl = max(_LANE, (tl // 2) // _LANE * _LANE)
    else:
        tl = l                               # ragged lane dim: full extent only
    tl_pad = _round_up(tl, _LANE)
    per_row = 2 * (c_in + c_out) * tl_pad * itemsize       # double-buffered in+out
    rows = max(1, budget_eff // per_row)
    if rows >= p or p <= sub:
        tp = p
    else:
        tp = min(p, max(sub, (rows // sub) * sub))
    # keep >=2 parallel grid steps so v7x's two TensorCores both get work
    steps = n * b_outer * (-(-p // tp)) * (-(-l // tl))
    if steps < 2:
        if p > sub:
            tp = max(sub, _round_up(-(-p // 2), sub))
        elif l % _LANE == 0 and l >= 2 * _LANE:
            tl = max(_LANE, _round_up(-(-l // 2), _LANE))
    return tp, tl


# ----------------------------- kernels ------------------------------------ #

def _pad_kernel(x_ref, o_ref, *, pad1, c_in, c_out):
    # x_ref: (c_in, *tile), o_ref: (c_out, *tile).  Three non-overlapping
    # stores along the channel axis; payload written exactly once.  In the
    # native (>=2 spatial dims) path the channel axis is an outer block dim,
    # so every store is a full-width (tp, tl) tile (no masked sublane writes).
    tail = tuple(o_ref.shape[1:])
    if pad1 > 0:
        o_ref[:pad1] = jnp.zeros((pad1,) + tail, o_ref.dtype)
    o_ref[pad1:pad1 + c_in] = x_ref[...]
    pad2 = c_out - pad1 - c_in
    if pad2 > 0:
        o_ref[pad1 + c_in:] = jnp.zeros((pad2,) + tail, o_ref.dtype)


def _project_kernel(x_ref, w_ref, b_ref, o_ref):
    # x_ref: (c_in, TILE_S), w_ref: (c_out, c_in), b_ref: (c_out, 1),
    # o_ref: (c_out, TILE_S).  Accumulate in f32 on the MXU, cast on store.
    # Output stays lane-dense (TILE_S on lanes) -> unmasked full-width stores.
    acc = jnp.dot(w_ref[...], x_ref[...], preferred_element_type=jnp.float32)
    o_ref[...] = (acc + b_ref[...].astype(jnp.float32)).astype(o_ref.dtype)


# ----------------------------- wrapper ------------------------------------ #

class ChannelPad:
    """JAX/Pallas equivalent of monai.networks.layers.simplelayers.ChannelPad."""

    def __init__(self, spatial_dims, in_channels, out_channels, mode="pad",
                 key=None, dtype=jnp.float32):
        self.spatial_dims = spatial_dims
        self.in_channels = in_channels
        self.out_channels = out_channels
        self.mode = mode
        self.weight = None
        self.bias = None
        self.pad = None

        if in_channels == out_channels:
            return

        if mode == "project":
            # Trainable 1x1 conv params (matches PyTorch Conv default init).
            if key is None:
                key = jax.random.PRNGKey(0)
            kw, kb = jax.random.split(key)
            bound = 1.0 / math.sqrt(in_channels)     # kernel_size == 1
            self.weight = jax.random.uniform(
                kw, (out_channels, in_channels), dtype, -bound, bound)
            self.bias = jax.random.uniform(
                kb, (out_channels, 1), dtype, -bound, bound)
            return

        if mode == "pad":
            if in_channels > out_channels:
                raise ValueError(
                    'Incompatible values: channel_matching="pad" and '
                    'in_channels > out_channels.')
            pad_1 = (out_channels - in_channels) // 2
            pad_2 = out_channels - in_channels - pad_1
            self.pad = (pad_1, pad_2)
            return

        raise ValueError(f"unsupported mode: {mode}")

    # -------------------------- pad, >=2 spatial dims ---------------------- #
    def _pad_native(self, x, n, c_in, c_out, spatial, itemsize, budget, limit):
        pad_1, _ = self.pad
        p, l = spatial[-2], spatial[-1]
        b_outer = 1
        for d in spatial[:-2]:
            b_outer *= d
        # (N, C, *lead, P, L) -> (N, C, B, P, L): only major (non-tiled) dims
        # are merged / inserted, so this reshape is layout-preserving.
        x5 = x.reshape(n, c_in, b_outer, p, l)

        tp, tl = _choose_tile_pl(p, l, b_outer, n, c_in, c_out, itemsize, budget)
        grid = (n, b_outer, pl.cdiv(p, tp), pl.cdiv(l, tl))

        x_spec = pl.BlockSpec((pl.Squeezed(), c_in, pl.Squeezed(), tp, tl),
                              lambda ni, bi, pi, li: (ni, 0, bi, pi, li))
        o_spec = pl.BlockSpec((pl.Squeezed(), c_out, pl.Squeezed(), tp, tl),
                              lambda ni, bi, pi, li: (ni, 0, bi, pi, li))
        kernel = functools.partial(_pad_kernel, pad1=pad_1,
                                   c_in=c_in, c_out=c_out)
        s_total = b_outer * p * l
        cost = pl.CostEstimate(
            flops=0, transcendentals=0,
            bytes_accessed=n * (c_in + c_out) * s_total * itemsize)
        y5 = pl.pallas_call(
            kernel,
            out_shape=jax.ShapeDtypeStruct((n, c_out, b_outer, p, l), x.dtype),
            grid_spec=pltpu.PrefetchScalarGridSpec(
                num_scalar_prefetch=0, grid=grid,
                in_specs=[x_spec], out_specs=o_spec),
            compiler_params=pltpu.CompilerParams(
                dimension_semantics=("parallel",) * 4,
                vmem_limit_bytes=limit),
            cost_estimate=cost,
        )(x5)
        return y5.reshape((n, c_out) + spatial)

    # ------------------------------ forward -------------------------------- #
    def __call__(self, x):
        if self.weight is None and self.pad is None:
            return x  # identity

        n = x.shape[0]
        c_in = x.shape[1]
        c_out = self.out_channels
        spatial = x.shape[2:]
        s = 1
        for d in spatial:
            s *= d
        assert c_in == self.in_channels

        itemsize = jnp.dtype(x.dtype).itemsize
        budget, limit = _vmem_caps()

        # Pad with >=2 spatial dims: grid over the native layout (no relayout
        # copies, no channel sublane padding, full-width channel-slice stores).
        if self.pad is not None and len(spatial) >= 2:
            return self._pad_native(x, n, c_in, c_out, spatial,
                                    itemsize, budget, limit)

        # Flattened (N, C, S) layout: needed for the project matmul (channels
        # on sublanes, S lane-dense); for 1-D spatial it IS the native layout.
        # For project with >=2 spatial dims the flatten may relayout at the
        # boundary; accepted, since the MXU contraction requires this layout.
        project = self.weight is not None
        x3 = x.reshape(n, c_in, s)
        tile_s = _choose_tile_s(s, c_in, c_out, itemsize, budget,
                                project=project, n_batch=n)
        grid = (n, pl.cdiv(s, tile_s))
        out_shape = jax.ShapeDtypeStruct((n, c_out, s), x.dtype)

        # Ragged S: trailing partial tile is a padded read / masked write;
        # both kernels are lane-independent so padded lanes never reach
        # valid outputs (invariant: no cross-lane reductions in kernels).
        x_spec = pl.BlockSpec((pl.Squeezed(), c_in, tile_s),
                              lambda i, j: (i, 0, j))
        o_spec = pl.BlockSpec((pl.Squeezed(), c_out, tile_s),
                              lambda i, j: (i, 0, j))
        compiler_params = pltpu.CompilerParams(
            dimension_semantics=("parallel", "parallel"),
            vmem_limit_bytes=limit)

        if project:
            # Constant index_maps keep W / bias VMEM-resident across the grid.
            w_spec = pl.BlockSpec((c_out, c_in), lambda i, j: (0, 0))
            b_spec = pl.BlockSpec((c_out, 1), lambda i, j: (0, 0))
            cost = pl.CostEstimate(
                flops=2 * n * c_out * c_in * s, transcendentals=0,
                bytes_accessed=(n * (c_in + c_out) * s
                                + c_out * c_in + c_out) * itemsize)
            y3 = pl.pallas_call(
                _project_kernel,
                out_shape=out_shape,
                grid_spec=pltpu.PrefetchScalarGridSpec(
                    num_scalar_prefetch=0, grid=grid,
                    in_specs=[x_spec, w_spec, b_spec], out_specs=o_spec),
                compiler_params=compiler_params,
                cost_estimate=cost,
            )(x3, self.weight, self.bias)
        else:
            pad_1, _ = self.pad
            kernel = functools.partial(_pad_kernel, pad1=pad_1,
                                       c_in=c_in, c_out=c_out)
            cost = pl.CostEstimate(
                flops=0, transcendentals=0,
                bytes_accessed=n * (c_in + c_out) * s * itemsize)
            y3 = pl.pallas_call(
                kernel,
                out_shape=out_shape,
                grid_spec=pltpu.PrefetchScalarGridSpec(
                    num_scalar_prefetch=0, grid=grid,
                    in_specs=[x_spec], out_specs=o_spec),
                compiler_params=compiler_params,
                cost_estimate=cost,
            )(x3)

        return y3.reshape((n, c_out) + spatial)


# ------------------------------ main --------------------------------------- #

if __name__ == "__main__":
    key = jax.random.PRNGKey(0)
    kx, kp, kx2, kx3, kx4 = jax.random.split(key, 5)

    N, C_IN, C_OUT, H, W = 2, 4, 8, 16, 16
    x = jax.random.normal(kx, (N, C_IN, H, W), jnp.float32)
    pad_1 = (C_OUT - C_IN) // 2
    pad_2 = C_OUT - C_IN - pad_1

    # --- mode="pad", 2-D spatial (native-layout path) ---
    mod_pad = ChannelPad(2, C_IN, C_OUT, mode="pad")
    y_pad = jax.block_until_ready(mod_pad(x))
    ref_pad = jnp.pad(x, ((0, 0), (pad_1, pad_2), (0, 0), (0, 0)))
    assert y_pad.shape == (N, C_OUT, H, W)
    assert jnp.allclose(y_pad, ref_pad)

    # --- mode="project", 2-D spatial (flattened MXU path) ---
    mod_proj = ChannelPad(2, C_IN, C_OUT, mode="project", key=kp)
    y_proj = jax.block_until_ready(mod_proj(x))
    ref_proj = (jnp.einsum("oc,nchw->nohw", mod_proj.weight, x)
                + mod_proj.bias.reshape(1, C_OUT, 1, 1))
    assert y_proj.shape == (N, C_OUT, H, W)
    assert jnp.allclose(y_proj, ref_proj, atol=1e-5, rtol=1e-5)

    # --- identity (in_channels == out_channels) ---
    mod_id = ChannelPad(2, C_IN, C_IN, mode="pad")
    assert jnp.allclose(jax.block_until_ready(mod_id(x)), x)

    # --- ragged 2-D spatial (full-extent trailing tiles) ---
    x2 = jax.random.normal(kx2, (N, C_IN, 5, 7), jnp.float32)
    y_pad2 = jax.block_until_ready(mod_pad(x2))
    assert jnp.allclose(y_pad2, jnp.pad(x2, ((0, 0), (pad_1, pad_2),
                                             (0, 0), (0, 0))))
    y_proj2 = jax.block_until_ready(mod_proj(x2))
    ref_proj2 = (jnp.einsum("oc,nchw->nohw", mod_proj.weight, x2)
                 + mod_proj.bias.reshape(1, C_OUT, 1, 1))
    assert jnp.allclose(y_proj2, ref_proj2, atol=1e-5, rtol=1e-5)

    # --- 3-D spatial, N=1 (exercises leading-spatial grid axis and the
    #     ">=2 parallel steps" split for v7x) ---
    x3d = jax.random.normal(kx3, (1, C_IN, 3, 6, 10), jnp.float32)
    mod_pad3 = ChannelPad(3, C_IN, C_OUT, mode="pad")
    y_pad3 = jax.block_until_ready(mod_pad3(x3d))
    assert jnp.allclose(y_pad3, jnp.pad(x3d, ((0, 0), (pad_1, pad_2),
                                              (0, 0), (0, 0), (0, 0))))
    mod_proj3 = ChannelPad(3, C_IN, C_OUT, mode="project", key=kp)
    y_proj3 = jax.block_until_ready(mod_proj3(x3d))
    ref_proj3 = (jnp.einsum("oc,ncdhw->nodhw", mod_proj3.weight, x3d)
                 + mod_proj3.bias.reshape(1, C_OUT, 1, 1, 1))
    assert jnp.allclose(y_proj3, ref_proj3, atol=1e-5, rtol=1e-5)

    # --- 1-D spatial (channel-on-sublane flattened pad path) ---
    x1d = jax.random.normal(kx4, (N, C_IN, 50), jnp.float32)
    mod_pad1 = ChannelPad(1, C_IN, C_OUT, mode="pad")
    y_pad1 = jax.block_until_ready(mod_pad1(x1d))
    assert jnp.allclose(y_pad1, jnp.pad(x1d, ((0, 0), (pad_1, pad_2), (0, 0))))

    print("KERNEL_OK")
</pallas_src>

<mosaic_0001>
module attributes {stable_mosaic.version = 11 : i64} {
  func.func @_pad_kernel(%arg0: i32, %arg1: i32, %arg2: i32, %arg3: i32, %arg4: memref<1x4x1x16x16xf32, #tpu.memory_space<vmem>>, %arg5: memref<1x8x1x16x16xf32, #tpu.memory_space<vmem>>) attributes {dimension_semantics = [#tpu.dimension_semantics<parallel>, #tpu.dimension_semantics<parallel>, #tpu.dimension_semantics<parallel>, #tpu.dimension_semantics<parallel>], iteration_bounds = array<i64: 2, 1, 1, 1>, scalar_prefetch = 0 : i64, scratch_operands = 0 : i64, tpu.core_type = #tpu.core_type<tc>, window_params = [{transform_indices = @transform_0, window_bounds = array<i64: 1, 4, 1, 16, 16>}, {transform_indices = @transform_1, window_bounds = array<i64: 1, 8, 1, 16, 16>}]} {
    %cst = arith.constant 0.000000e+00 : f32
    %0 = vector.broadcast %cst : f32 to vector<2x16x16xf32>
    %c0 = arith.constant 0 : index
    %c0_0 = arith.constant 0 : index
    %c0_1 = arith.constant 0 : index
    %c0_2 = arith.constant 0 : index
    %c0_3 = arith.constant 0 : index
    %1 = vector.load %arg5[%c0, %c0_0, %c0_1, %c0_2, %c0_3] : memref<1x8x1x16x16xf32, #tpu.memory_space<vmem>>, vector<1x2x1x16x16xf32>
    %2 = vector.shape_cast %1 : vector<1x2x1x16x16xf32> to vector<2x16x16xf32>
    %3 = vector.shape_cast %0 : vector<2x16x16xf32> to vector<1x2x1x16x16xf32>
    tpu.vector_store %arg5[%c0, %c0_0, %c0_1, %c0_2, %c0_3], %3 {strides = array<i32>} : memref<1x8x1x16x16xf32, #tpu.memory_space<vmem>>, vector<1x2x1x16x16xf32>,
    %c0_4 = arith.constant 0 : index
    %c0_5 = arith.constant 0 : index
    %c0_6 = arith.constant 0 : index
    %c0_7 = arith.constant 0 : index
    %c0_8 = arith.constant 0 : index
    %4 = vector.load %arg4[%c0_4, %c0_5, %c0_6, %c0_7, %c0_8] : memref<1x4x1x16x16xf32, #tpu.memory_space<vmem>>, vector<1x4x1x16x16xf32>
    %5 = vector.shape_cast %4 : vector<1x4x1x16x16xf32> to vector<4x16x16xf32>
    %c0_9 = arith.constant 0 : index
    %c2 = arith.constant 2 : index
    %c0_10 = arith.constant 0 : index
    %c0_11 = arith.constant 0 : index
    %c0_12 = arith.constant 0 : index
    %6 = vector.load %arg5[%c0_9, %c2, %c0_10, %c0_11, %c0_12] : memref<1x8x1x16x16xf32, #tpu.memory_space<vmem>>, vector<1x4x1x16x16xf32>
    %7 = vector.shape_cast %6 : vector<1x4x1x16x16xf32> to vector<4x16x16xf32>
    %8 = vector.shape_cast %5 : vector<4x16x16xf32> to vector<1x4x1x16x16xf32>
    tpu.vector_store %arg5[%c0_9, %c2, %c0_10, %c0_11, %c0_12], %8 {strides = array<i32>} : memref<1x8x1x16x16xf32, #tpu.memory_space<vmem>>, vector<1x4x1x16x16xf32>,
    %cst_13 = arith.constant 0.000000e+00 : f32
    %9 = vector.broadcast %cst_13 : f32 to vector<2x16x16xf32>
    %c0_14 = arith.constant 0 : index
    %c6 = arith.constant 6 : index
    %c0_15 = arith.constant 0 : index
    %c0_16 = arith.constant 0 : index
    %c0_17 = arith.constant 0 : index
    %10 = vector.load %arg5[%c0_14, %c6, %c0_15, %c0_16, %c0_17] : memref<1x8x1x16x16xf32, #tpu.memory_space<vmem>>, vector<1x2x1x16x16xf32>
    %11 = vector.shape_cast %10 : vector<1x2x1x16x16xf32> to vector<2x16x16xf32>
    %12 = vector.shape_cast %9 : vector<2x16x16xf32> to vector<1x2x1x16x16xf32>
    tpu.vector_store %arg5[%c0_14, %c6, %c0_15, %c0_16, %c0_17], %12 {strides = array<i32>} : memref<1x8x1x16x16xf32, #tpu.memory_space<vmem>>, vector<1x2x1x16x16xf32>,
    return
  }
  func.func @transform_0(%arg0: i32, %arg1: i32, %arg2: i32, %arg3: i32) -> (i32, i32, i32, i32, i32) {
    %c0_i32 = arith.constant 0 : i32
    %c0_i32_0 = arith.constant 0 : i32
    return %arg0, %c0_i32, %arg1, %arg2, %arg3 : i32, i32, i32, i32, i32
  }
  func.func @transform_1(%arg0: i32, %arg1: i32, %arg2: i32, %arg3: i32) -> (i32, i32, i32, i32, i32) {
    %c0_i32 = arith.constant 0 : i32
    %c0_i32_0 = arith.constant 0 : i32
    return %arg0, %c0_i32, %arg1, %arg2, %arg3 : i32, i32, i32, i32, i32
  }
}

</mosaic_0001>

<llo_original>
// kernel: tpu_custom_call.1
$region0: #{tpu_custom_call.1}
  #allocation0 [shape = 'u32[]', space=smem, size = 0x4, offset = 0x4, fixed_abs, tag = 'smem constant byte address 0x4 - core index']
  #allocation1 [shape = 'u32[72,128]{1,0:T(1,128)}', space=vmem, size = 0x9000, scoped, tag = 'internal scratch']
  %s0 = inlined_call_operand.hbm [shape: f32[2,4,1,16,16], index: 0, kind: input, shape index: {}]
  %s1 = inlined_call_operand.hbm [shape: f32[2,8,1,16,16], index: 1, kind: output, shape index: {}]
  %s2 = sld [smem:[#allocation0]]
  $region41: #{tpu_custom_call.1} parent=0
    _
  %s4 = ssub.s32 1, %s2
  %s5 = scalar_select 0, %s4, %s2
  $region1: #{tpu_custom_call.1} parent=0
    #allocation2 [shape = 'u8[65536]{0}', space=vmem, size = 0x10000, scoped, tag = 'input window, operand 0']
    #allocation3 [shape = 's32[2]{0}', space=sflag, size = 0x8, scoped, tag = 'scoped memory for tpu_custom_call.1']
    #allocation4 [shape = 's32[2]{0}', space=sflag, size = 0x8, scoped, tag = 'scoped memory for tpu_custom_call.1']
    #allocation5 [shape = 'u8[131072]{0}', space=vmem, size = 0x20000, scoped, tag = 'output window, operand 0']
    %6 = vsyncpa [#allocation3], 0
    %s7 = scalar_lea.sflag [#allocation3], 1
    %8 = vsyncpa %s7, 0
    %9 = vsyncpa [#allocation4], 0
    %s10 = scalar_lea.sflag [#allocation4], 1
    %11 = vsyncpa %s10, 0
    loop: start=0, step=1, limit=4
    $region2: #{tpu_custom_call.1} parent=1 // loop_pre_header
      _
    $region3: #{tpu_custom_call.1} parent=1 // loop_header
      %s13 = sphi 0, %s17
      %p14 = scmp.ge.s32.totalorder %s13, 4
      %s20 = sphi 0, %s46
      %s21 = sphi 0, %s42
      %s22 = sphi 0, %s38
      %s23 = sphi 0, %s34
      %s24 = sphi 0, %s20
      %s25 = sphi 0, %s21
      %s26 = sphi 0, %s22
      %s27 = sphi 0, %s23
      %s28 = sphi 0, %s24
      %s29 = sphi 0, %s25
      %s30 = sphi 0, %s26
      %s31 = sphi 0, %s27
      %s55 = sphi 0, %s57
      %s58 = sphi 0, %s55
      %s59 = sphi 0, %s58
      %s75 = sphi 0, %s59
      %s87 = sphi 0, %s89
      %s90 = sphi 0, %s87
      %s91 = sphi 0, %s90
      %s107 = sphi 0, %s91
    $region4: #{tpu_custom_call.1} parent=1 // loop_header_branch
      %16 = sbr.rel (%p14) target = $region8
    $region5: #{tpu_custom_call.1} parent=1 // loop_body
      %s18 = ssub.s32 %s13, 1
      %s19 = ssub.s32 %s13, 2
      %s32 = sadd.s32 1, %s23
      %p33 = scmp.ge.s32.totalorder %s32, 1
      %s34 = scalar_select %p33, 0, %s32
      %s35 = sadd.s32 1, %s22
      %s36 = scalar_select %p33, %s35, %s22
      %p37 = scmp.ge.s32.totalorder %s36, 1
      %s38 = scalar_select %p37, 0, %s36
      %s39 = sadd.s32 1, %s21
      %s40 = scalar_select %p37, %s39, %s21
      %p41 = scmp.ge.s32.totalorder %s40, 1
      %s42 = scalar_select %p41, 0, %s40
      %s43 = sadd.s32 1, %s20
      %s44 = scalar_select %p41, %s43, %s20
      %p45 = scmp.ge.s32.totalorder %s44, 2
      %s46 = scalar_select %p45, 0, %s44
      %s47 = ssub.s32 %s20, %s46
      %s48 = ssub.s32 %s21, %s42
      %s49 = sor.u32 %s47, %s48
      %s50 = ssub.s32 %s22, %s38
      %s51 = sor.u32 %s49, %s50
      %s52 = ssub.s32 %s23, %s34
      %s53 = sor.u32 %s51, %s52
      %p54 = scmp.eq.s32.totalorder %s53, 0
      %s56 = sadd.s32 %s55, 1
      %s57 = scalar_select %p54, %s55, %s56
      %p60 = pneg %p54
      %p61 = scmp.eq.s32.totalorder %s13, 1
      %p62 = por %p60, %p61
      %p63 = scmp.ne.s32.totalorder %s55, %s58
      %p64 = scmp.eq.s32.totalorder %s13, 0
      %p65 = por %p63, %p64
      %p66 = scmp.ne.s32.totalorder %s55, %s58
      %p67 = scmp.eq.s32.totalorder %s18, 1
      %p68 = por %p66, %p67
      %p69 = scmp.ne.s32.totalorder %s58, %s59
      %p70 = scmp.eq.s32.totalorder %s18, 0
      %p71 = por %p69, %p70
      %p72 = scmp.ne.s32.totalorder %s58, %s59
      %p73 = scmp.eq.s32.totalorder %s19, 1
      %p74 = por %p72, %p73
      %p76 = scmp.ne.s32.totalorder %s59, %s75
      %p77 = scmp.eq.s32.totalorder %s19, 0
      %p78 = por %p76, %p77
      %s79 = ssub.s32 %s20, %s46
      %s80 = ssub.s32 %s21, %s42
      %s81 = sor.u32 %s79, %s80
      %s82 = ssub.s32 %s22, %s38
      %s83 = sor.u32 %s81, %s82
      %s84 = ssub.s32 %s23, %s34
      %s85 = sor.u32 %s83, %s84
      %p86 = scmp.eq.s32.totalorder %s85, 0
      %s88 = sadd.s32 %s87, 1
      %s89 = scalar_select %p86, %s87, %s88
      %p92 = pneg %p86
      %p93 = scmp.eq.s32.totalorder %s13, 1
      %p94 = por %p92, %p93
      %p95 = scmp.ne.s32.totalorder %s87, %s90
      %p96 = scmp.eq.s32.totalorder %s13, 0
      %p97 = por %p95, %p96
      %p98 = scmp.ne.s32.totalorder %s87, %s90
      %p99 = scmp.eq.s32.totalorder %s18, 1
      %p100 = por %p98, %p99
      %p101 = scmp.ne.s32.totalorder %s90, %s91
      %p102 = scmp.eq.s32.totalorder %s18, 0
      %p103 = por %p101, %p102
      %p104 = scmp.ne.s32.totalorder %s90, %s91
      %p105 = scmp.eq.s32.totalorder %s19, 1
      %p106 = por %p104, %p105
      %p108 = scmp.ne.s32.totalorder %s91, %s107
      %p109 = scmp.eq.s32.totalorder %s19, 0
      %p110 = por %p108, %p109
      %p111 = scmp.le.s32.totalorder 1, %s13
      %p112 = scmp.lt.s32.totalorder %s13, 3
      %p113 = pnand %p111, %p112
      %p114 = pneg %p113
      // Predicated region
      $region9: #{tpu_custom_call.1} parent=5 // pred_check
        _
      $region10: #{tpu_custom_call.1} parent=5 // pred_check_branch
        %116 = sbr.rel (%p113) target = $region12
      $region11: #{tpu_custom_call.1} parent=5 // pred_region
        %s117 = ssub.s32 %s13, 1
      $region12: #{tpu_custom_call.1} parent=5 // pred_fallthru
        _
      %p118 = scmp.lt.s32.totalorder %s13, 2
      // Predicated region
      $region13: #{tpu_custom_call.1} parent=5 // pred_check
        %p119 = pneg %p118
      $region14: #{tpu_custom_call.1} parent=5 // pred_check_branch
        %121 = sbr.rel (%p119) target = $region16
      $region15: #{tpu_custom_call.1} parent=5 // pred_region
        // Predicated region
        $region17: #{tpu_custom_call.1} parent=15 // pred_check
          %p122 = pneg %p65
        $region18: #{tpu_custom_call.1} parent=15 // pred_check_branch
          %124 = sbr.rel (%p122) target = $region20
        $region19: #{tpu_custom_call.1} parent=15 // pred_region
          %s125 = sand.u32 %s55, 1
          %s126 = scalar_lea.sflag [#allocation3], %s125
          %s127 = sand.u32 %s55, 1
          %s128 = smul.addr %s127, 64
          %s129 = scalar_lea.vmem [#allocation2], %s128
          %s130 = smul.u32 2, %s22
          %132 = vsyncadd %s126, 0
          %s133 = sadd.s32 %s23, %s130
          %s134 = smul.addr %s21, 2
          %s135 = sadd.s32 %s133, %s134
          %s136 = smul.addr %s20, 8
          %s137 = sadd.s32 %s135, %s136
          %s138 = smul.addr %s137, 8
          %s139 = scalar_lea.hbm %s0, %s138
          %s140 = sshll.u32 %s139, 4
          %s141 = int_to_ptr.hbm [resolvable:$true] %s140
          %s142 = sshll.u32 %s129, 4
          %s143 = int_to_ptr.vmem [resolvable:$true] %s142
          %148 = dma.hbm_to_vmem [thread:$0]  %s141, 1024, %s143, %s126, 128, 128, 8
        $region20: #{tpu_custom_call.1} parent=15 // pred_fallthru
          _
      $region16: #{tpu_custom_call.1} parent=5 // pred_fallthru
        _
      %p149 = scmp.le.s32.totalorder 1, %s13
      %p150 = scmp.lt.s32.totalorder %s13, 3
      %p151 = pnand %p149, %p150
      %p152 = pneg %p151
      // Predicated region
      $region21: #{tpu_custom_call.1} parent=5 // pred_check
        _
      $region22: #{tpu_custom_call.1} parent=5 // pred_check_branch
        %154 = sbr.rel (%p151) target = $region24
      $region23: #{tpu_custom_call.1} parent=5 // pred_region
        %s155 = ssub.s32 %s13, 1
        %s156 = sand.u32 %s58, 1
        %s157 = scalar_lea.sflag [#allocation3], %s156
        %s158 = sand.u32 %s58, 1
        %s159 = smul.addr %s158, 64
        %s160 = scalar_lea.vmem [#allocation2], %s159
        // Predicated region
        $region25: #{tpu_custom_call.1} parent=23 // pred_check
          %p161 = pneg %p71
        $region26: #{tpu_custom_call.1} parent=23 // pred_check_branch
          %163 = sbr.rel (%p161) target = $region28
        $region27: #{tpu_custom_call.1} parent=23 // pred_region
          %165 = dma.done %s157, 1024
        $region28: #{tpu_custom_call.1} parent=23 // pred_fallthru
          _
        %s166 = sand.u32 %s58, 1
        %s167 = scalar_lea.sflag [#allocation3], %s166
        %s168 = sand.u32 %s58, 1
        %s169 = smul.addr %s168, 64
        %s170 = scalar_lea.vmem [#allocation2], %s169
        %p171 = pneg %p71
        %p172 = pneg %p68
        %p173 = pneg %p103
        %p174 = pneg %p100
        %s175 = sand.u32 %s90, 1
        %s176 = scalar_lea.sflag [#allocation4], %s175
        %s177 = sand.u32 %s90, 1
        %s178 = smul.addr %s177, 128
        %s179 = scalar_lea.vmem [#allocation5], %s178
        %s180 = smul.u32 2, %s26
        %s181 = smul.u32 2, %s26
        %vm182 = vcmask 130048
        %183 = vst.msk [vmem:[%s179] sm:$0xff] %vm182, 0.0
        %184 = vst.msk [vmem:[%s179 + $0x8] sm:$0xff] %vm182, 0.0
        %185 = vst.msk [vmem:[%s179 + $0x10] sm:$0xff] %vm182, 0.0
        %186 = vst.msk [vmem:[%s179 + $0x18] sm:$0xff] %vm182, 0.0
        %v187 = vld [vmem:[%s160] sm:$0xff]
        %v188 = vld [vmem:[%s160 + $0x8] sm:$0xff]
        %v189 = vld [vmem:[%s160 + $0x10] sm:$0xff]
        %v190 = vld [vmem:[%s160 + $0x18] sm:$0xff]
        %v191 = vld [vmem:[%s160 + $0x20] sm:$0xff]
        %v192 = vld [vmem:[%s160 + $0x28] sm:$0xff]
        %v193 = vld [vmem:[%s160 + $0x30] sm:$0xff]
        %v194 = vld [vmem:[%s160 + $0x38] sm:$0xff]
        %s195 = scalar_lea.vmem %s179, 32 [#allocation5]
        %196 = vst.msk [vmem:[%s195] sm:$0xff] %vm182, %v187
        %197 = vst.msk [vmem:[%s195 + $0x8] sm:$0xff] %vm182, %v188
        %198 = vst.msk [vmem:[%s195 + $0x10] sm:$0xff] %vm182, %v189
        %199 = vst.msk [vmem:[%s195 + $0x18] sm:$0xff] %vm182, %v190
        %200 = vst.msk [vmem:[%s195 + $0x20] sm:$0xff] %vm182, %v191
        %201 = vst.msk [vmem:[%s195 + $0x28] sm:$0xff] %vm182, %v192
        %202 = vst.msk [vmem:[%s195 + $0x30] sm:$0xff] %vm182, %v193
        %203 = vst.msk [vmem:[%s195 + $0x38] sm:$0xff] %vm182, %v194
        %s204 = scalar_lea.vmem %s179, 96 [#allocation5]
        %205 = vst.msk [vmem:[%s204] sm:$0xff] %vm182, 0.0
        %206 = vst.msk [vmem:[%s204 + $0x8] sm:$0xff] %vm182, 0.0
        %207 = vst.msk [vmem:[%s204 + $0x10] sm:$0xff] %vm182, 0.0
        %208 = vst.msk [vmem:[%s204 + $0x18] sm:$0xff] %vm182, 0.0
        %s209 = sand.u32 %s90, 1
        %s210 = scalar_lea.sflag [#allocation4], %s209
        %s211 = sand.u32 %s90, 1
        %s212 = smul.addr %s211, 128
        %s213 = scalar_lea.vmem [#allocation5], %s212
        // Predicated region
        $region29: #{tpu_custom_call.1} parent=23 // pred_check
          %p214 = pneg %p100
        $region30: #{tpu_custom_call.1} parent=23 // pred_check_branch
          %216 = sbr.rel (%p214) target = $region32
        $region31: #{tpu_custom_call.1} parent=23 // pred_region
          %s217 = smul.u32 2, %s26
          %219 = vsyncadd %s210, 0
          %s220 = sadd.s32 %s27, %s217
          %s221 = smul.addr %s25, 2
          %s222 = sadd.s32 %s220, %s221
          %s223 = smul.addr %s24, 16
          %s224 = sadd.s32 %s222, %s223
          %s225 = smul.addr %s224, 8
          %s226 = scalar_lea.hbm %s1, %s225
          %s227 = sshll.u32 %s213, 4
          %s228 = int_to_ptr.vmem [resolvable:$true] %s227
          %s229 = sshll.u32 %s226, 4
          %s230 = int_to_ptr.hbm [resolvable:$true] %s229
          %235 = dma.vmem_to_hbm [thread:$0]  %s228, 2048, %s230, %s210, 128, 128, 8
        $region32: #{tpu_custom_call.1} parent=23 // pred_fallthru
          _
      $region24: #{tpu_custom_call.1} parent=5 // pred_fallthru
        _
      %p236 = scmp.le.s32.totalorder 2, %s13
      // Predicated region
      $region33: #{tpu_custom_call.1} parent=5 // pred_check
        %p237 = pneg %p236
      $region34: #{tpu_custom_call.1} parent=5 // pred_check_branch
        %239 = sbr.rel (%p237) target = $region36
      $region35: #{tpu_custom_call.1} parent=5 // pred_region
        %s240 = ssub.s32 %s13, 2
        // Predicated region
        $region37: #{tpu_custom_call.1} parent=35 // pred_check
          %p241 = pneg %p106
        $region38: #{tpu_custom_call.1} parent=35 // pred_check_branch
          %243 = sbr.rel (%p241) target = $region40
        $region39: #{tpu_custom_call.1} parent=35 // pred_region
          %s244 = sand.u32 %s91, 1
          %s245 = scalar_lea.sflag [#allocation4], %s244
          %s246 = sand.u32 %s91, 1
          %s247 = smul.addr %s246, 128
          %s248 = scalar_lea.vmem [#allocation5], %s247
          %250 = dma.done %s245, 2048
        $region40: #{tpu_custom_call.1} parent=35 // pred_fallthru
          _
      $region36: #{tpu_custom_call.1} parent=5 // pred_fallthru
        _
    $region6: #{tpu_custom_call.1} parent=1 // loop_footer
      %s17 = sadd.s32 1, %s13
    $region7: #{tpu_custom_call.1} parent=1 // loop_footer_branch
      %12 = sbr.rel target = $region3
    $region8: #{tpu_custom_call.1} parent=1 // loop_exit
      _
    %251 = vsyncpa [#allocation3], 1
    %s252 = scalar_lea.sflag [#allocation3], 1
    %253 = vsyncpa %s252, 1
    %254 = vsyncpa [#allocation4], 1
    %s255 = scalar_lea.sflag [#allocation4], 1
    %256 = vsyncpa %s255, 1

</llo_original>
